<compile_context>
chip_gen: v7x
topology: tpu7x:2x2x1
jax: 0.10.0
libtpu: 0.0.40
codegen_flags: <defaults>
</compile_context>

<pallas_src>
import functools

import jax
import jax.numpy as jnp
from jax.experimental import pallas as pl
from jax.experimental.pallas import tpu as pltpu


def _round_up(x, m):
    return (x + m - 1) // m * m


def _autoencoder_kernel(x_ref, wt_ref, o_ref, *, v_valid, v_padded):
    # x_ref:  (TN, Dp)  gathered embeddings (zero-padded rows/cols)
    # wt_ref: (Dp, Vp)  pre-transposed decoder weight, resident across the grid
    # o_ref:  (TN, Vp)  log-probabilities (padded vocab columns are junk; sliced off outside)
    h = jnp.tanh(x_ref[...])                                            # (TN, Dp) f32
    logits = jnp.dot(h, wt_ref[...], preferred_element_type=jnp.float32)  # (TN, Vp) MXU, no .T

    if v_valid != v_padded:
        # Mask padded vocab columns so they do not contribute to max / LSE.
        col = jax.lax.broadcasted_iota(jnp.int32, logits.shape, 1)
        logits = jnp.where(col < v_valid, logits, jnp.float32(-1e30))

    # log_softmax over the vocab axis (PyTorch dim=1 for an (N, V) tensor), max-stabilized.
    m = jnp.max(logits, axis=-1, keepdims=True)
    z = logits - m
    lse = jnp.log(jnp.sum(jnp.exp(z), axis=-1, keepdims=True))
    o_ref[...] = (z - lse).astype(o_ref.dtype)


def autoencoder_forward(input_vec, enc_weight, dec_weight, *, tn_max=512):
    """Pallas forward: log_softmax(tanh(E[input_vec]) @ W.T, axis=1)."""
    V, D = enc_weight.shape
    assert dec_weight.shape == (V, D)
    N = input_vec.shape[0]

    # Lane-dense padding: last dims to multiples of 128, batch to a multiple of the row tile.
    Dp = _round_up(D, 128)
    Vp = _round_up(V, 128)
    Np = _round_up(N, 128)
    tn = 128
    for cand in (512, 384, 256, 128):          # largest 128-multiple row tile that divides Np
        if cand <= tn_max and Np % cand == 0:
            tn = cand
            break

    # Glue: embedding gather + padding in plain JAX.
    # TODO(synk): fuse the gather into the kernel (scalar-prefetch indices + per-row DMA) to
    # avoid the intermediate (N, D) HBM round-trip.
    x = enc_weight[input_vec].astype(jnp.float32)                       # (N, D)
    x = jnp.pad(x, ((0, Np - N), (0, Dp - D)))                          # (Np, Dp)

    # Pre-transposed decoder weight (D, V) -> padded (Dp, Vp); zero padding is exact for the dot.
    wt = jnp.pad(dec_weight.astype(jnp.float32).T, ((0, Dp - D), (0, Vp - V)))  # (Dp, Vp)

    kernel = functools.partial(_autoencoder_kernel, v_valid=V, v_padded=Vp)

    out = pl.pallas_call(
        kernel,
        out_shape=jax.ShapeDtypeStruct((Np, Vp), jnp.float32),
        grid_spec=pltpu.PrefetchScalarGridSpec(
            num_scalar_prefetch=0,
            grid=(Np // tn,),
            in_specs=[
                pl.BlockSpec((tn, Dp), lambda i: (i, 0)),   # row tile of embeddings
                # Constant index_map -> weight stays resident; only DMA'd once. (For very large
                # vocabularies, tile V on a second "arbitrary" grid axis with an online LSE.)
                pl.BlockSpec((Dp, Vp), lambda i: (0, 0)),
            ],
            out_specs=pl.BlockSpec((tn, Vp), lambda i: (i, 0)),
        ),
        compiler_params=pltpu.CompilerParams(
            dimension_semantics=("parallel",),
            vmem_limit_bytes=64 * 1024 * 1024,
        ),
        cost_estimate=pl.CostEstimate(
            flops=2 * Np * Dp * Vp,
            transcendentals=Np * Vp + Np * Dp,
            bytes_accessed=4 * (Np * Dp + Dp * Vp + Np * Vp),
        ),
    )(x, wt)

    return out[:N, :V]


def autoencoder_reference(input_vec, enc_weight, dec_weight):
    x = jnp.tanh(enc_weight[input_vec].astype(jnp.float32))
    logits = x @ dec_weight.astype(jnp.float32).T
    return jax.nn.log_softmax(logits, axis=1)


if __name__ == "__main__":
    V, D = 64, 32      # vocab size, embedding dim
    N = 16             # batch of token indices

    key = jax.random.PRNGKey(0)
    k_enc, k_dec, k_idx = jax.random.split(key, 3)

    # nn.init.uniform_ -> U[0, 1)
    enc_weight = jax.random.uniform(k_enc, (V, D), dtype=jnp.float32)
    dec_weight = jax.random.uniform(k_dec, (V, D), dtype=jnp.float32)
    input_vec = jax.random.randint(k_idx, (N,), 0, V, dtype=jnp.int32)

    out = autoencoder_forward(input_vec, enc_weight, dec_weight)
    out = jax.block_until_ready(out)

    ref = autoencoder_reference(input_vec, enc_weight, dec_weight)
    assert out.shape == (N, V)
    assert jnp.allclose(out, ref, atol=1e-4, rtol=1e-4), "Pallas output mismatch vs reference"

    print("KERNEL_OK")
</pallas_src>

<mosaic_0001>
module attributes {stable_mosaic.version = 11 : i64} {
  func.func @_autoencoder_kernel(%arg0: i32, %arg1: memref<128x128xf32, #tpu.memory_space<vmem>>, %arg2: memref<128x128xf32, #tpu.memory_space<vmem>>, %arg3: memref<128x128xf32, #tpu.memory_space<vmem>>) attributes {dimension_semantics = [#tpu.dimension_semantics<parallel>], iteration_bounds = array<i64: 1>, scalar_prefetch = 0 : i64, scratch_operands = 0 : i64, tpu.core_type = #tpu.core_type<tc>, window_params = [{transform_indices = @transform_0, window_bounds = array<i64: 128, 128>}, {pipeline_mode = #tpu.pipeline_mode<synchronous>, transform_indices = @transform_1, window_bounds = array<i64: 128, 128>}, {transform_indices = @transform_2, window_bounds = array<i64: 128, 128>}]} {
    %c0 = arith.constant 0 : index
    %c0_0 = arith.constant 0 : index
    %0 = vector.load %arg1[%c0, %c0_0] : memref<128x128xf32, #tpu.memory_space<vmem>>, vector<128x128xf32>
    %1 = math.tanh %0 : vector<128x128xf32>
    %c0_1 = arith.constant 0 : index
    %c0_2 = arith.constant 0 : index
    %2 = vector.load %arg2[%c0_1, %c0_2] : memref<128x128xf32, #tpu.memory_space<vmem>>, vector<128x128xf32>
    %cst = arith.constant dense<0.000000e+00> : vector<128x128xf32>
    %3 = tpu.matmul %1, %2, %cst {dimension_numbers = #tpu.dot_dimension_numbers<[1], [0], [0], [1], [0, 0, 1, 1], [], []>} : vector<128x128xf32>, vector<128x128xf32>, vector<128x128xf32> -> vector<128x128xf32>
    %4 = tpu.iota {dimensions = array<i32: 1>} : vector<128x128xi32>
    %c64_i32 = arith.constant 64 : i32
    %5 = vector.broadcast %c64_i32 : i32 to vector<128x128xi32>
    %6 = arith.cmpi slt, %4, %5 : vector<128x128xi32>
    %cst_3 = arith.constant -1.000000e+30 : f32
    %7 = vector.broadcast %cst_3 : f32 to vector<128x128xf32>
    %8 = arith.select %6, %3, %7 : vector<128x128xi1>, vector<128x128xf32>
    %cst_4 = arith.constant dense<0xFF800000> : vector<128xf32>
    %9 = vector.multi_reduction <maximumf>, %8, %cst_4 [1] : vector<128x128xf32> to vector<128xf32>
    %10 = vector.shape_cast %9 : vector<128xf32> to vector<128x1xf32>
    %11 = vector.broadcast %10 : vector<128x1xf32> to vector<128x128xf32>
    %12 = arith.subf %8, %11 : vector<128x128xf32>
    %13 = math.exp %12 : vector<128x128xf32>
    %cst_5 = arith.constant dense<0.000000e+00> : vector<128xf32>
    %14 = vector.multi_reduction <add>, %13, %cst_5 [1] : vector<128x128xf32> to vector<128xf32>
    %15 = vector.shape_cast %14 : vector<128xf32> to vector<128x1xf32>
    %16 = math.log %15 : vector<128x1xf32>
    %17 = vector.broadcast %16 : vector<128x1xf32> to vector<128x128xf32>
    %18 = arith.subf %12, %17 : vector<128x128xf32>
    %c0_6 = arith.constant 0 : index
    %c0_7 = arith.constant 0 : index
    %19 = vector.load %arg3[%c0_6, %c0_7] : memref<128x128xf32, #tpu.memory_space<vmem>>, vector<128x128xf32>
    tpu.vector_store %arg3[%c0_6, %c0_7], %18 {strides = array<i32>} : memref<128x128xf32, #tpu.memory_space<vmem>>, vector<128x128xf32>,
    return
  }
  func.func @transform_0(%arg0: i32) -> (i32, i32) {
    %c0_i32 = arith.constant 0 : i32
    %c0_i32_0 = arith.constant 0 : i32
    return %arg0, %c0_i32 : i32, i32
  }
  func.func @transform_1(%arg0: i32) -> (i32, i32) {
    %c0_i32 = arith.constant 0 : i32
    %c0_i32_0 = arith.constant 0 : i32
    %c0_i32_1 = arith.constant 0 : i32
    return %c0_i32, %c0_i32_0 : i32, i32
  }
  func.func @transform_2(%arg0: i32) -> (i32, i32) {
    %c0_i32 = arith.constant 0 : i32
    %c0_i32_0 = arith.constant 0 : i32
    return %arg0, %c0_i32 : i32, i32
  }
}

</mosaic_0001>

<llo_original>
// kernel: tpu_custom_call.1
$region0: #{tpu_custom_call.1}
  #allocation0 [shape = 'u32[]', space=smem, size = 0x4, offset = 0x4, fixed_abs, tag = 'smem constant byte address 0x4 - core index']
  #allocation1 [shape = 'u32[144,128]{1,0:T(1,128)}', space=vmem, size = 0x12000, scoped, tag = 'internal scratch']
  %s0 = inlined_call_operand.hbm [shape: f32[128,128], index: 0, kind: input, shape index: {}]
  %s1 = inlined_call_operand.hbm [shape: f32[128,128], index: 1, kind: input, shape index: {}]
  %s2 = inlined_call_operand.hbm [shape: f32[128,128], index: 2, kind: output, shape index: {}]
  %s3 = sld [smem:[#allocation0]]
  $region26: #{tpu_custom_call.1} parent=0
    _
  %s5 = ssub.s32 1, %s3
  %s6 = scalar_select 0, %s5, %s3
  $region1: #{tpu_custom_call.1} parent=0
    #allocation2 [shape = 'u8[65536]{0}', space=vmem, size = 0x10000, scoped, tag = 'input window, operand 0, single buffered']
    #allocation3 [shape = 's32[1]{0}', space=sflag, size = 0x4, scoped, tag = 'scoped memory for tpu_custom_call.1']
    #allocation4 [shape = 's32[1]{0}', space=sflag, size = 0x4, scoped, tag = 'scoped memory for tpu_custom_call.1']
    #allocation5 [shape = 'u8[65536]{0}', space=vmem, size = 0x10000, scoped, tag = 'input window, operand 1, single buffered']
    #allocation6 [shape = 's32[1]{0}', space=sflag, size = 0x4, scoped, tag = 'scoped memory for tpu_custom_call.1']
    #allocation7 [shape = 'u8[65536]{0}', space=vmem, size = 0x10000, scoped, tag = 'output window, operand 0, single buffered']
    %7 = vsyncpa [#allocation3], 0
    %8 = vsyncpa [#allocation6], 0
    %9 = vsyncpa [#allocation4], 0
    // Predicated region
    $region2: #{tpu_custom_call.1} parent=1 // pred_check
      _
    $region3: #{tpu_custom_call.1} parent=1 // pred_check_branch
      %11 = sbr.rel (0) target = $region5
    $region4: #{tpu_custom_call.1} parent=1 // pred_region
      %s13 = ssub.s32 2048, 2048
      %14 = vsyncadd [#allocation3], %s13
      %s15 = sshll.u32 [#allocation2], 4
      %s16 = int_to_ptr.vmem [resolvable:$true] %s15
      %21 = dma.hbm_to_vmem [thread:$0]  %s0, 2048, %s16, [#allocation3], 128, 128, 8
    $region5: #{tpu_custom_call.1} parent=1 // pred_fallthru
      _
    // Predicated region
    $region6: #{tpu_custom_call.1} parent=1 // pred_check
      _
    $region7: #{tpu_custom_call.1} parent=1 // pred_check_branch
      %23 = sbr.rel (0) target = $region9
    $region8: #{tpu_custom_call.1} parent=1 // pred_region
      %s25 = ssub.s32 2048, 2048
      %26 = vsyncadd [#allocation6], %s25
      %s27 = sshll.u32 [#allocation5], 4
      %s28 = int_to_ptr.vmem [resolvable:$true] %s27
      %33 = dma.hbm_to_vmem [thread:$0]  %s1, 2048, %s28, [#allocation6], 128, 128, 8
    $region9: #{tpu_custom_call.1} parent=1 // pred_fallthru
      _
    // Predicated region
    $region10: #{tpu_custom_call.1} parent=1 // pred_check
      _
    $region11: #{tpu_custom_call.1} parent=1 // pred_check_branch
      %35 = sbr.rel (0) target = $region13
    $region12: #{tpu_custom_call.1} parent=1 // pred_region
      %36 = dma.done [#allocation3], 2048
    $region13: #{tpu_custom_call.1} parent=1 // pred_fallthru
      _
    // Predicated region
    $region14: #{tpu_custom_call.1} parent=1 // pred_check
      _
    $region15: #{tpu_custom_call.1} parent=1 // pred_check_branch
      %38 = sbr.rel (0) target = $region17
    $region16: #{tpu_custom_call.1} parent=1 // pred_region
      %39 = dma.done [#allocation6], 2048
    $region17: #{tpu_custom_call.1} parent=1 // pred_fallthru
      _
    %v40 = vld [vmem:[#allocation2] sm:$0xff]
    %v41 = vld [vmem:[#allocation2 + $0x8] sm:$0xff]
    %v42 = vld [vmem:[#allocation2 + $0x10] sm:$0xff]
    %v43 = vld [vmem:[#allocation2 + $0x18] sm:$0xff]
    %v44 = vld [vmem:[#allocation2 + $0x20] sm:$0xff]
    %v45 = vld [vmem:[#allocation2 + $0x28] sm:$0xff]
    %v46 = vld [vmem:[#allocation2 + $0x30] sm:$0xff]
    %v47 = vld [vmem:[#allocation2 + $0x38] sm:$0xff]
    %v48 = vld [vmem:[#allocation2 + $0x40] sm:$0xff]
    %v49 = vld [vmem:[#allocation2 + $0x48] sm:$0xff]
    %v50 = vld [vmem:[#allocation2 + $0x50] sm:$0xff]
    %v51 = vld [vmem:[#allocation2 + $0x58] sm:$0xff]
    %v52 = vld [vmem:[#allocation2 + $0x60] sm:$0xff]
    %v53 = vld [vmem:[#allocation2 + $0x68] sm:$0xff]
    %v54 = vld [vmem:[#allocation2 + $0x70] sm:$0xff]
    %v55 = vld [vmem:[#allocation2 + $0x78] sm:$0xff]
    %v56 = vtanh.pop %v40
    %v57 = vtanh.pop %v41
    %v58 = vtanh.pop %v42
    %v59 = vtanh.pop %v43
    %v60 = vtanh.pop %v44
    %v61 = vtanh.pop %v45
    %v62 = vtanh.pop %v46
    %v63 = vtanh.pop %v47
    %v64 = vtanh.pop %v48
    %v65 = vtanh.pop %v49
    %v66 = vtanh.pop %v50
    %v67 = vtanh.pop %v51
    %v68 = vtanh.pop %v52
    %v69 = vtanh.pop %v53
    %v70 = vtanh.pop %v54
    %v71 = vtanh.pop %v55
    %v72 = vld [vmem:[#allocation5] sm:$0xff]
    %v73 = vld [vmem:[#allocation5 + $0x8] sm:$0xff]
    %v74 = vld [vmem:[#allocation5 + $0x10] sm:$0xff]
    %v75 = vld [vmem:[#allocation5 + $0x18] sm:$0xff]
    %v76 = vld [vmem:[#allocation5 + $0x20] sm:$0xff]
    %v77 = vld [vmem:[#allocation5 + $0x28] sm:$0xff]
    %v78 = vld [vmem:[#allocation5 + $0x30] sm:$0xff]
    %v79 = vld [vmem:[#allocation5 + $0x38] sm:$0xff]
    %v80 = vld [vmem:[#allocation5 + $0x40] sm:$0xff]
    %v81 = vld [vmem:[#allocation5 + $0x48] sm:$0xff]
    %v82 = vld [vmem:[#allocation5 + $0x50] sm:$0xff]
    %v83 = vld [vmem:[#allocation5 + $0x58] sm:$0xff]
    %v84 = vld [vmem:[#allocation5 + $0x60] sm:$0xff]
    %v85 = vld [vmem:[#allocation5 + $0x68] sm:$0xff]
    %v86 = vld [vmem:[#allocation5 + $0x70] sm:$0xff]
    %v87 = vld [vmem:[#allocation5 + $0x78] sm:$0xff]
    %88 = vmatprep.subr.mxu0 0.0
    %89 = vmatpush1.msra.mxu0 %v72
    %90 = vmatprep.subr.mxu0 0.0
    %91 = vmatpush1.msra.mxu0 %v73
    %92 = vmatprep.subr.mxu0 0.0
    %93 = vmatpush1.msra.mxu0 %v74
    %94 = vmatprep.subr.mxu0 0.0
    %95 = vmatpush1.msra.mxu0 %v75
    %96 = vmatprep.subr.mxu0 0.0
    %97 = vmatpush1.msra.mxu0 %v76
    %98 = vmatprep.subr.mxu0 0.0
    %99 = vmatpush1.msra.mxu0 %v77
    %100 = vmatprep.subr.mxu0 0.0
    %101 = vmatpush1.msra.mxu0 %v78
    %102 = vmatprep.subr.mxu0 0.0
    %103 = vmatpush1.msra.mxu0 %v79
    %104 = vmatprep.subr.mxu0 0.0
    %105 = vmatpush1.msra.mxu0 %v80
    %106 = vmatprep.subr.mxu0 0.0
    %107 = vmatpush1.msra.mxu0 %v81
    %108 = vmatprep.subr.mxu0 0.0
    %109 = vmatpush1.msra.mxu0 %v82
    %110 = vmatprep.subr.mxu0 0.0
    %111 = vmatpush1.msra.mxu0 %v83
    %112 = vmatprep.subr.mxu0 0.0
    %113 = vmatpush1.msra.mxu0 %v84
    %114 = vmatprep.subr.mxu0 0.0
    %115 = vmatpush1.msra.mxu0 %v85
    %116 = vmatprep.subr.mxu0 0.0
    %117 = vmatpush1.msra.mxu0 %v86
    %118 = vmatprep.subr.mxu0 0.0
    %119 = vmatpush1.msra.mxu0 %v87
    %120 = vmatprep.subr.mxu0 0.0
    %121 = vmatpush1.msra.mxu0 0.0
    %122 = vmatprep.subr.mxu0 0.0
    %123 = vmatpush1.msra.mxu0 0.0
    %124 = vmatprep.subr.mxu0 0.0
    %125 = vmatpush1.msra.mxu0 0.0
    %126 = vmatprep.subr.mxu0 0.0
    %127 = vmatpush1.msra.mxu0 0.0
    %128 = vmatprep.subr.mxu0 0.0
    %129 = vmatpush1.msra.mxu0 0.0
    %130 = vmatprep.subr.mxu0 0.0
    %131 = vmatpush1.msra.mxu0 0.0
    %132 = vmatprep.subr.mxu0 0.0
    %133 = vmatpush1.msra.mxu0 0.0
    %134 = vmatprep.subr.mxu0 0.0
    %135 = vmatpush1.msra.mxu0 0.0
    %136 = vmatprep.subr.mxu0 0.0
    %137 = vmatpush1.msra.mxu0 0.0
    %138 = vmatprep.subr.mxu0 0.0
    %139 = vmatpush1.msra.mxu0 0.0
    %140 = vmatprep.subr.mxu0 0.0
    %141 = vmatpush1.msra.mxu0 0.0
    %142 = vmatprep.subr.mxu0 0.0
    %143 = vmatpush1.msra.mxu0 0.0
    %144 = vmatprep.subr.mxu0 0.0
    %145 = vmatpush1.msra.mxu0 0.0
    %146 = vmatprep.subr.mxu0 0.0
    %147 = vmatpush1.msra.mxu0 0.0
    %148 = vmatprep.subr.mxu0 0.0
    %149 = vmatpush1.msra.mxu0 0.0
    %150 = vmatprep.subr.mxu0 0.0
    %151 = vmatpush1.msra.mxu0 0.0
    %152 = vmatprep.mubr.f32.mxu0 0.0
    %153 = vmatmul.mubr.f32.gmra.mrb[0].mxu0 %v56
    %v154 = vpop.f32.mrb[0].mxu0
    %v155 = vadd.f32 0.0, %v154
    %v156 = vpop.f32.mrb[0].mxu0
    %157 = vmatprep.mubr.f32.mxu0 0.0
    %158 = vmatmul.mubr.f32.gmra.mrb[0].mxu0 %v57
    %v159 = vpop.f32.mrb[0].mxu0
    %v160 = vadd.f32 0.0, %v159
    %v161 = vpop.f32.mrb[0].mxu0
    %162 = vmatprep.mubr.f32.mxu0 0.0
    %163 = vmatmul.mubr.f32.gmra.mrb[0].mxu0 %v58
    %v164 = vpop.f32.mrb[0].mxu0
    %v165 = vadd.f32 0.0, %v164
    %v166 = vpop.f32.mrb[0].mxu0
    %167 = vmatprep.mubr.f32.mxu0 0.0
    %168 = vmatmul.mubr.f32.gmra.mrb[0].mxu0 %v59
    %v169 = vpop.f32.mrb[0].mxu0
    %v170 = vadd.f32 0.0, %v169
    %v171 = vpop.f32.mrb[0].mxu0
    %172 = vmatprep.mubr.f32.mxu0 0.0
    %173 = vmatmul.mubr.f32.gmra.mrb[0].mxu0 %v60
    %v174 = vpop.f32.mrb[0].mxu0
    %v175 = vadd.f32 0.0, %v174
    %v176 = vpop.f32.mrb[0].mxu0
    %177 = vmatprep.mubr.f32.mxu0 0.0
    %178 = vmatmul.mubr.f32.gmra.mrb[0].mxu0 %v61
    %v179 = vpop.f32.mrb[0].mxu0
    %v180 = vadd.f32 0.0, %v179
    %v181 = vpop.f32.mrb[0].mxu0
    %182 = vmatprep.mubr.f32.mxu0 0.0
    %183 = vmatmul.mubr.f32.gmra.mrb[0].mxu0 %v62
    %v184 = vpop.f32.mrb[0].mxu0
    %v185 = vadd.f32 0.0, %v184
    %v186 = vpop.f32.mrb[0].mxu0
    %187 = vmatprep.mubr.f32.mxu0 0.0
    %188 = vmatmul.mubr.f32.gmra.mrb[0].mxu0 %v63
    %v189 = vpop.f32.mrb[0].mxu0
    %v190 = vadd.f32 0.0, %v189
    %v191 = vpop.f32.mrb[0].mxu0
    %192 = vmatprep.mubr.f32.mxu0 0.0
    %193 = vmatmul.mubr.f32.gmra.mrb[0].mxu0 %v64
    %v194 = vpop.f32.mrb[0].mxu0
    %v195 = vadd.f32 0.0, %v194
    %v196 = vpop.f32.mrb[0].mxu0
    %197 = vmatprep.mubr.f32.mxu0 0.0
    %198 = vmatmul.mubr.f32.gmra.mrb[0].mxu0 %v65
    %v199 = vpop.f32.mrb[0].mxu0
    %v200 = vadd.f32 0.0, %v199
    %v201 = vpop.f32.mrb[0].mxu0
    %202 = vmatprep.mubr.f32.mxu0 0.0
    %203 = vmatmul.mubr.f32.gmra.mrb[0].mxu0 %v66
    %v204 = vpop.f32.mrb[0].mxu0
    %v205 = vadd.f32 0.0, %v204
    %v206 = vpop.f32.mrb[0].mxu0
    %207 = vmatprep.mubr.f32.mxu0 0.0
    %208 = vmatmul.mubr.f32.gmra.mrb[0].mxu0 %v67
    %v209 = vpop.f32.mrb[0].mxu0
    %v210 = vadd.f32 0.0, %v209
    %v211 = vpop.f32.mrb[0].mxu0
    %212 = vmatprep.mubr.f32.mxu0 0.0
    %213 = vmatmul.mubr.f32.gmra.mrb[0].mxu0 %v68
    %v214 = vpop.f32.mrb[0].mxu0
    %v215 = vadd.f32 0.0, %v214
    %v216 = vpop.f32.mrb[0].mxu0
    %217 = vmatprep.mubr.f32.mxu0 0.0
    %218 = vmatmul.mubr.f32.gmra.mrb[0].mxu0 %v69
    %v219 = vpop.f32.mrb[0].mxu0
    %v220 = vadd.f32 0.0, %v219
    %v221 = vpop.f32.mrb[0].mxu0
    %222 = vmatprep.mubr.f32.mxu0 0.0
    %223 = vmatmul.mubr.f32.gmra.mrb[0].mxu0 %v70
    %v224 = vpop.f32.mrb[0].mxu0
    %v225 = vadd.f32 0.0, %v224
    %v226 = vpop.f32.mrb[0].mxu0
    %227 = vmatprep.mubr.f32.mxu0 0.0
    %228 = vmatmul.mubr.f32.gmra.mrb[0].mxu0 %v71
    %v229 = vpop.f32.mrb[0].mxu0
    %v230 = vadd.f32 0.0, %v229
    %v231 = vpop.f32.mrb[0].mxu0
    %232 = vdwg.mxu0
    %v233 = vlaneseq
    %v234 = vand.u32 %v233, 127
    %vm235 = vcmp.lt.s32.totalorder %v234, 64
    %v236 = vsel %vm235, %v155, -1e+30
    %v237 = vsel %vm235, %v160, -1e+30
    %v238 = vsel %vm235, %v165, -1e+30
    %v239 = vsel %vm235, %v170, -1e+30
    %v240 = vsel %vm235, %v175, -1e+30
    %v241 = vsel %vm235, %v180, -1e+30
    %v242 = vsel %vm235, %v185, -1e+30
    %v243 = vsel %vm235, %v190, -1e+30
    %v244 = vsel %vm235, %v195, -1e+30
    %v245 = vsel %vm235, %v200, -1e+30
    %v246 = vsel %vm235, %v205, -1e+30
    %v247 = vsel %vm235, %v210, -1e+30
    %v248 = vsel %vm235, %v215, -1e+30
    %v249 = vsel %vm235, %v220, -1e+30
    %v250 = vsel %vm235, %v225, -1e+30
    %v251 = vsel %vm235, %v230, -1e+30
    %252 = vmax.xlane.f32.xlu0 %v236
    %v253 = vpop.xlane.xlu0 %252
    %254 = vmax.xlane.f32.xlu0 %v237
    %v255 = vpop.xlane.xlu0 %254
    %256 = vmax.xlane.f32.xlu0 %v238
    %v257 = vpop.xlane.xlu0 %256
    %258 = vmax.xlane.f32.xlu0 %v239
    %v259 = vpop.xlane.xlu0 %258
    %260 = vmax.xlane.f32.xlu0 %v240
    %v261 = vpop.xlane.xlu0 %260
    %262 = vmax.xlane.f32.xlu0 %v241
    %v263 = vpop.xlane.xlu0 %262
    %264 = vmax.xlane.f32.xlu0 %v242
    %v265 = vpop.xlane.xlu0 %264
    %266 = vmax.xlane.f32.xlu0 %v243
    %v267 = vpop.xlane.xlu0 %266
    %268 = vmax.xlane.f32.xlu0 %v244
    %v269 = vpop.xlane.xlu0 %268
    %270 = vmax.xlane.f32.xlu0 %v245
    %v271 = vpop.xlane.xlu0 %270
    %272 = vmax.xlane.f32.xlu0 %v246
    %v273 = vpop.xlane.xlu0 %272
    %274 = vmax.xlane.f32.xlu0 %v247
    %v275 = vpop.xlane.xlu0 %274
    %276 = vmax.xlane.f32.xlu0 %v248
    %v277 = vpop.xlane.xlu0 %276
    %278 = vmax.xlane.f32.xlu0 %v249
    %v279 = vpop.xlane.xlu0 %278
    %280 = vmax.xlane.f32.xlu0 %v250
    %v281 = vpop.xlane.xlu0 %280
    %282 = vmax.xlane.f32.xlu0 %v251
    %v283 = vpop.xlane.xlu0 %282
    %v284 = vsub.f32 %v236, %v253
    %v285 = vsub.f32 %v237, %v255
    %v286 = vsub.f32 %v238, %v257
    %v287 = vsub.f32 %v239, %v259
    %v288 = vsub.f32 %v240, %v261
    %v289 = vsub.f32 %v241, %v263
    %v290 = vsub.f32 %v242, %v265
    %v291 = vsub.f32 %v243, %v267
    %v292 = vsub.f32 %v244, %v269
    %v293 = vsub.f32 %v245, %v271
    %v294 = vsub.f32 %v246, %v273
    %v295 = vsub.f32 %v247, %v275
    %v296 = vsub.f32 %v248, %v277
    %v297 = vsub.f32 %v249, %v279
    %v298 = vsub.f32 %v250, %v281
    %v299 = vsub.f32 %v251, %v283
    %v300 = vmul.f32 %v284, 1.442695
    %v301 = vpow.pop %v300
    %v302 = vmul.f32 %v285, 1.442695
    %v303 = vpow.pop %v302
    %v304 = vmul.f32 %v286, 1.442695
    %v305 = vpow.pop %v304
    %v306 = vmul.f32 %v287, 1.442695
    %v307 = vpow.pop %v306
    %v308 = vmul.f32 %v288, 1.442695
    %v309 = vpow.pop %v308
    %v310 = vmul.f32 %v289, 1.442695
    %v311 = vpow.pop %v310
    %v312 = vmul.f32 %v290, 1.442695
    %v313 = vpow.pop %v312
    %v314 = vmul.f32 %v291, 1.442695
    %v315 = vpow.pop %v314
    %v316 = vmul.f32 %v292, 1.442695
    %v317 = vpow.pop %v316
    %v318 = vmul.f32 %v293, 1.442695
    %v319 = vpow.pop %v318
    %v320 = vmul.f32 %v294, 1.442695
    %v321 = vpow.pop %v320
    %v322 = vmul.f32 %v295, 1.442695
    %v323 = vpow.pop %v322
    %v324 = vmul.f32 %v296, 1.442695
    %v325 = vpow.pop %v324
    %v326 = vmul.f32 %v297, 1.442695
    %v327 = vpow.pop %v326
    %v328 = vmul.f32 %v298, 1.442695
    %v329 = vpow.pop %v328
    %v330 = vmul.f32 %v299, 1.442695
    %v331 = vpow.pop %v330
    %332 = vadd.xlane.f32.xlu0 %v301
    %v333 = vpop.xlane.xlu0 %332
    %334 = vadd.xlane.f32.xlu0 %v303
    %v335 = vpop.xlane.xlu0 %334
    %336 = vadd.xlane.f32.xlu0 %v305
    %v337 = vpop.xlane.xlu0 %336
    %338 = vadd.xlane.f32.xlu0 %v307
    %v339 = vpop.xlane.xlu0 %338
    %340 = vadd.xlane.f32.xlu0 %v309
    %v341 = vpop.xlane.xlu0 %340
    %342 = vadd.xlane.f32.xlu0 %v311
    %v343 = vpop.xlane.xlu0 %342
    %344 = vadd.xlane.f32.xlu0 %v313
    %v345 = vpop.xlane.xlu0 %344
    %346 = vadd.xlane.f32.xlu0 %v315
    %v347 = vpop.xlane.xlu0 %346
    %348 = vadd.xlane.f32.xlu0 %v317
    %v349 = vpop.xlane.xlu0 %348
    %350 = vadd.xlane.f32.xlu0 %v319
    %v351 = vpop.xlane.xlu0 %350
    %352 = vadd.xlane.f32.xlu0 %v321
    %v353 = vpop.xlane.xlu0 %352
    %354 = vadd.xlane.f32.xlu0 %v323
    %v355 = vpop.xlane.xlu0 %354
    %356 = vadd.xlane.f32.xlu0 %v325
    %v357 = vpop.xlane.xlu0 %356
    %358 = vadd.xlane.f32.xlu0 %v327
    %v359 = vpop.xlane.xlu0 %358
    %360 = vadd.xlane.f32.xlu0 %v329
    %v361 = vpop.xlane.xlu0 %360
    %362 = vadd.xlane.f32.xlu0 %v331
    %v363 = vpop.xlane.xlu0 %362
    %v364 = vlog2.pop %v333
    %v365 = vmul.f32 %v364, 0.6931472
    %v366 = vlog2.pop %v335
    %v367 = vmul.f32 %v366, 0.6931472
    %v368 = vlog2.pop %v337
    %v369 = vmul.f32 %v368, 0.6931472
    %v370 = vlog2.pop %v339
    %v371 = vmul.f32 %v370, 0.6931472
    %v372 = vlog2.pop %v341
    %v373 = vmul.f32 %v372, 0.6931472
    %v374 = vlog2.pop %v343
    %v375 = vmul.f32 %v374, 0.6931472
    %v376 = vlog2.pop %v345
    %v377 = vmul.f32 %v376, 0.6931472
    %v378 = vlog2.pop %v347
    %v379 = vmul.f32 %v378, 0.6931472
    %v380 = vlog2.pop %v349
    %v381 = vmul.f32 %v380, 0.6931472
    %v382 = vlog2.pop %v351
    %v383 = vmul.f32 %v382, 0.6931472
    %v384 = vlog2.pop %v353
    %v385 = vmul.f32 %v384, 0.6931472
    %v386 = vlog2.pop %v355
    %v387 = vmul.f32 %v386, 0.6931472
    %v388 = vlog2.pop %v357
    %v389 = vmul.f32 %v388, 0.6931472
    %v390 = vlog2.pop %v359
    %v391 = vmul.f32 %v390, 0.6931472
    %v392 = vlog2.pop %v361
    %v393 = vmul.f32 %v392, 0.6931472
    %v394 = vlog2.pop %v363
    %v395 = vmul.f32 %v394, 0.6931472
    %v396 = vsub.f32 %v284, %v365
    %v397 = vsub.f32 %v285, %v367
    %v398 = vsub.f32 %v286, %v369
    %v399 = vsub.f32 %v287, %v371
    %v400 = vsub.f32 %v288, %v373
    %v401 = vsub.f32 %v289, %v375
    %v402 = vsub.f32 %v290, %v377
    %v403 = vsub.f32 %v291, %v379
    %v404 = vsub.f32 %v292, %v381
    %v405 = vsub.f32 %v293, %v383
    %v406 = vsub.f32 %v294, %v385
    %v407 = vsub.f32 %v295, %v387
    %v408 = vsub.f32 %v296, %v389
    %v409 = vsub.f32 %v297, %v391
    %v410 = vsub.f32 %v298, %v393
    %v411 = vsub.f32 %v299, %v395
    %412 = vst [vmem:[#allocation7] sm:$0xff] %v396
    %413 = vst [vmem:[#allocation7 + $0x8] sm:$0xff] %v397
    %414 = vst [vmem:[#allocation7 + $0x10] sm:$0xff] %v398
    %415 = vst [vmem:[#allocation7 + $0x18] sm:$0xff] %v399
    %416 = vst [vmem:[#allocation7 + $0x20] sm:$0xff] %v400
    %417 = vst [vmem:[#allocation7 + $0x28] sm:$0xff] %v401
    %418 = vst [vmem:[#allocation7 + $0x30] sm:$0xff] %v402
    %419 = vst [vmem:[#allocation7 + $0x38] sm:$0xff] %v403
    %420 = vst [vmem:[#allocation7 + $0x40] sm:$0xff] %v404
    %421 = vst [vmem:[#allocation7 + $0x48] sm:$0xff] %v405
    %422 = vst [vmem:[#allocation7 + $0x50] sm:$0xff] %v406
    %423 = vst [vmem:[#allocation7 + $0x58] sm:$0xff] %v407
    %424 = vst [vmem:[#allocation7 + $0x60] sm:$0xff] %v408
    %425 = vst [vmem:[#allocation7 + $0x68] sm:$0xff] %v409
    %426 = vst [vmem:[#allocation7 + $0x70] sm:$0xff] %v410
    %427 = vst [vmem:[#allocation7 + $0x78] sm:$0xff] %v411
    // Predicated region
    $region18: #{tpu_custom_call.1} parent=1 // pred_check
      _
    $region19: #{tpu_custom_call.1} parent=1 // pred_check_branch
      %429 = sbr.rel (0) target = $region21
    $region20: #{tpu_custom_call.1} parent=1 // pred_region
      %s431 = ssub.s32 2048, 2048
      %432 = vsyncadd [#allocation4], %s431
      %s433 = sshll.u32 [#allocation7], 4
      %s434 = int_to_ptr.vmem [resolvable:$true] %s433
      %439 = dma.vmem_to_hbm [thread:$0]  %s434, 2048, %s2, [#allocation4], 128, 128, 8
    $region21: #{tpu_custom_call.1} parent=1 // pred_fallthru
      _
    // Predicated region
    $region22: #{tpu_custom_call.1} parent=1 // pred_check
      _
    $region23: #{tpu_custom_call.1} parent=1 // pred_check_branch
      %441 = sbr.rel (0) target = $region25
    $region24: #{tpu_custom_call.1} parent=1 // pred_region
      %442 = dma.done [#allocation4], 2048
    $region25: #{tpu_custom_call.1} parent=1 // pred_fallthru
      _
    %443 = vsyncpa [#allocation3], 1
    %444 = vsyncpa [#allocation6], 1
    %445 = vsyncpa [#allocation4], 1

</llo_original>
